<compile_context>
chip_gen: v7x
topology: tpu7x:2x2x1
jax: 0.10.0
libtpu: 0.0.40
codegen_flags: <defaults>
</compile_context>

<pallas_src>
import functools

import jax
import jax.numpy as jnp
from jax import lax
from jax.experimental import pallas as pl
from jax.experimental.pallas import tpu as pltpu

_NEG = -1e30          # large-negative mask value (finite -> no inf-inf NaNs)
_EPS2 = 1e-24         # (F.normalize eps = 1e-12) squared


def _proxynca_kernel(x_ref, p_ref, lbl_ref, out_ref,
                     xs_ref, m_ref, l_ref, acc_ref, *,
                     scale, use_running_max, p_prenormalized,
                     needs_col_mask, num_valid_last):
    c_idx = pl.program_id(1)
    n_c = pl.num_programs(1)
    tb = x_ref.shape[0]
    tc = p_ref.shape[0]
    two_s2 = 2.0 * scale * scale

    # ---- once per batch tile: normalize X (2x folded in), reset state -----
    @pl.when(c_idx == 0)
    def _init():
        x = x_ref[...]
        inv_x = lax.rsqrt(jnp.maximum(
            jnp.sum(x * x, axis=-1, keepdims=True), _EPS2))
        xs_ref[...] = ((2.0 * scale) * inv_x * x).astype(xs_ref.dtype)
        l_ref[...] = jnp.zeros_like(l_ref)
        acc_ref[...] = jnp.zeros_like(acc_ref)
        if use_running_max:
            m_ref[...] = jnp.full_like(m_ref, _NEG)

    # ---- per class tile: P is pre-normalized in the wrapper when there is
    #      more than one batch tile; otherwise normalize it here once. ------
    if p_prenormalized:
        ps = p_ref[...]
    else:
        p = p_ref[...]
        inv_p = lax.rsqrt(jnp.maximum(
            jnp.sum(p * p, axis=-1, keepdims=True), _EPS2))
        ps = (scale * inv_p * p).astype(xs_ref.dtype)

    # xs @ ps^T on the MXU, contracting last dims (no explicit transpose).
    xp = lax.dot_general(xs_ref[...], ps,
                         dimension_numbers=(((1,), (1,)), ((), ())),
                         preferred_element_type=jnp.float32)     # (TB, TC)

    # ||scale*nx||^2 = ||scale*np||^2 = scale^2, so
    #   logits = -D = 2*scale^2*cos - 2*scale^2 = xp - 2*scale^2
    # (the 2x is folded into xs); the clamp max(D, 0) becomes min(logits, 0).
    logits = jnp.minimum(xp - two_s2, 0.0)

    lane = lax.broadcasted_iota(jnp.int32, (tb, tc), 1)
    rel_lbl = lbl_ref[...] - c_idx * tc     # (TB, 1); labels (always < C) and
                                            # padded rows (-1) never hit
                                            # padded proxy columns.

    def _accum(lg):
        if use_running_max:
            m_prev = m_ref[...]
            m_new = jnp.maximum(m_prev, jnp.max(lg, axis=-1, keepdims=True))
            alpha = jnp.exp(m_prev - m_new)
            l_ref[...] = alpha * l_ref[...] + jnp.sum(
                jnp.exp(lg - m_new), axis=-1, keepdims=True)
            m_ref[...] = m_new
        else:
            # logits bounded in [-4*scale^2, 0] -> exp cannot overflow and
            # cannot fully underflow: plain sum-exp, no max bookkeeping.
            l_ref[...] += jnp.sum(jnp.exp(lg), axis=-1, keepdims=True)
        acc_ref[...] += jnp.sum(jnp.where(lane == rel_lbl, lg, 0.0),
                                axis=-1, keepdims=True)

    def _finalize():
        if use_running_max:
            lse = m_ref[...] + jnp.log(l_ref[...])
        else:
            lse = jnp.log(l_ref[...])
        valid = lbl_ref[...] >= 0
        # per-row loss = -(log_softmax(-D)[i, label_i]) = lse - logit_label
        out_ref[...] = jnp.where(valid, lse - acc_ref[...], 0.0)

    if needs_col_mask:
        # Padded proxy columns only exist in the very last class tile; mask
        # (and finalize) only there so non-last iterations skip the compare
        # and select entirely.
        is_last = c_idx == n_c - 1

        @pl.when(jnp.logical_not(is_last))
        def _body():
            _accum(logits)

        @pl.when(is_last)
        def _body_last():
            _accum(jnp.where(lane < num_valid_last, logits, _NEG))
            _finalize()
    else:
        _accum(logits)

        @pl.when(c_idx == n_c - 1)
        def _last():
            _finalize()


def _round_up(v, m):
    return ((v + m - 1) // m) * m


def _vmem_capacity_bytes():
    try:
        return int(pltpu.get_tpu_info().vmem_capacity_bytes)
    except Exception:
        return 64 * 1024 * 1024   # conservative fallback (v7x per-core VMEM)


def _choose_class_tile(c, e, tb, p_bytes, vmem_limit):
    # Double-buffered P tile: ~40% of the scoped VMEM limit.
    p_budget = int(0.40 * vmem_limit)
    tc = (p_budget // (2 * p_bytes * max(e, 1))) // 128 * 128
    # (TB, TC) f32 elementwise temporaries (~6 live): ~25% of the limit.
    t_budget = int(0.25 * vmem_limit)
    tc_tmp = (t_budget // (6 * 4 * max(tb, 1))) // 128 * 128
    tc = max(128, min(tc, tc_tmp))
    return min(tc, _round_up(c, 128))


def proxynca_prob_loss(x, proxies, labels, nb_classes, scale, *, mxu_bf16=None):
    """ProxyNCA_prob forward. x: (B,E) f32, proxies: (C,E) f32, labels: (B,) int."""
    x = x.astype(jnp.float32)
    proxies = proxies.astype(jnp.float32)
    labels = labels.astype(jnp.int32)

    b, e = x.shape
    c, e2 = proxies.shape
    assert e == e2
    assert int(nb_classes) == c, "module uses nb_classes == len(proxies)"

    scale = float(scale)
    # logits live in [-4*scale^2, 0]; drop the running max only when that is
    # comfortably inside the f32 exp range.
    use_running_max = (4.0 * scale * scale) >= 60.0

    # bf16 MXU feed pays off once the kernel is MXU/DMA bound (larger E);
    # keep f32 for small embeddings where the precision is free.
    if mxu_bf16 is None:
        mxu_bf16 = e >= 256
    mxu_dtype = jnp.bfloat16 if mxu_bf16 else jnp.float32

    vmem_cap = _vmem_capacity_bytes()
    vmem_limit = min(int(0.75 * vmem_cap), 96 * 1024 * 1024)

    # Batch tile: aim for >= 2 batch tiles when B > 8 so v7x's second
    # TensorCore has work; sublane/packing aligned.
    align = 16 if mxu_bf16 else 8
    if b <= 8:
        tb = _round_up(b, align)
    else:
        tb = min(256, _round_up(pl.cdiv(b, 2), align))
    nb_t = pl.cdiv(b, tb)
    bp = nb_t * tb

    # P is pre-normalized (and cast for the MXU) once in the wrapper only
    # when the inner loop would otherwise renormalize it nb_t > 1 times.
    p_prenormalized = nb_t > 1
    p_feed_dtype = mxu_dtype if p_prenormalized else jnp.float32
    p_bytes = jnp.dtype(p_feed_dtype).itemsize

    tc = _choose_class_tile(c, e, tb, p_bytes, vmem_limit)
    nc_t = pl.cdiv(c, tc)
    cp = nc_t * tc

    needs_col_mask = cp > c
    num_valid_last = c - (nc_t - 1) * tc   # valid columns in the last tile

    # --- prepare (padded) inputs -------------------------------------------
    if p_prenormalized:
        inv_p = lax.rsqrt(jnp.maximum(
            jnp.sum(proxies * proxies, axis=-1, keepdims=True), _EPS2))
        p_in = (scale * inv_p * proxies).astype(p_feed_dtype)
    else:
        p_in = proxies
    if cp > c:
        p_in = jnp.pad(p_in, ((0, cp - c), (0, 0)))

    if bp > b:
        x_in = jnp.pad(x, ((0, bp - b), (0, 0)))
        lbl_in = jnp.pad(labels, (0, bp - b), constant_values=-1)
    else:
        x_in = x
        lbl_in = labels
    lbl_in = lbl_in.reshape(bp, 1)

    kernel = functools.partial(
        _proxynca_kernel,
        scale=scale,
        use_running_max=use_running_max,
        p_prenormalized=p_prenormalized,
        needs_col_mask=needs_col_mask,
        num_valid_last=num_valid_last)

    per_row = pl.pallas_call(
        kernel,
        out_shape=jax.ShapeDtypeStruct((bp, 1), jnp.float32),
        grid_spec=pltpu.PrefetchScalarGridSpec(
            num_scalar_prefetch=0,
            grid=(nb_t, nc_t),
            in_specs=[
                pl.BlockSpec((tb, e), lambda i, j: (i, 0)),   # X batch tile
                pl.BlockSpec((tc, e), lambda i, j: (j, 0)),   # P class tile
                pl.BlockSpec((tb, 1), lambda i, j: (i, 0)),   # labels
            ],
            out_specs=pl.BlockSpec((tb, 1), lambda i, j: (i, 0)),
            scratch_shapes=[
                pltpu.VMEM((tb, e), mxu_dtype),     # cached 2*scale*normalize(X)
                pltpu.VMEM((tb, 1), jnp.float32),   # running max (large-scale path)
                pltpu.VMEM((tb, 1), jnp.float32),   # running sum-exp
                pltpu.VMEM((tb, 1), jnp.float32),   # label-logit accumulator
            ],
        ),
        compiler_params=pltpu.CompilerParams(
            dimension_semantics=("parallel", "arbitrary"),
            vmem_limit_bytes=vmem_limit,
        ),
    )(x_in, p_in, lbl_in)

    # Padded rows contribute exactly 0; divide by the true batch size.
    return jnp.sum(per_row) / jnp.float32(b)


def _reference_loss(x, proxies, labels, nb_classes, scale):
    """Pure-JAX reference for correctness checking."""
    def l2n(a):
        return a / jnp.maximum(jnp.linalg.norm(a, axis=-1, keepdims=True), 1e-12)
    xs = scale * l2n(x)
    ps = scale * l2n(proxies)
    d = (jnp.sum(xs * xs, -1, keepdims=True)
         + jnp.sum(ps * ps, -1)[None, :]
         - 2.0 * xs @ ps.T)
    d = jnp.maximum(d, 0.0)
    log_sm = jax.nn.log_softmax(-d, axis=-1)
    t = jax.nn.one_hot(labels, nb_classes, dtype=jnp.float32)
    return jnp.mean(jnp.sum(-t * log_sm, axis=-1))


if __name__ == "__main__":
    def make_inputs(case_id, nb_classes, sz_embed, batch):
        k = jax.random.fold_in(jax.random.PRNGKey(0), case_id)
        kp, kx, kt = jax.random.split(k, 3)
        # torch.randn(nb_classes, sz_embed) / 8  (deterministic synthetic init)
        proxies = jax.random.normal(kp, (nb_classes, sz_embed), jnp.float32) / 8.0
        x = jax.random.normal(kx, (batch, sz_embed), jnp.float32)
        labels = jax.random.randint(kt, (batch,), 0, nb_classes, jnp.int32)
        return proxies, x, labels

    cases = [
        # (nb_classes, sz_embed, batch, scale, tol)
        (16, 32, 8, 3.0, 1e-4),     # module-default sizes; no-running-max path
        (300, 64, 24, 3.0, 1e-4),   # padded classes + 2 batch tiles (P pre-norm)
        (300, 64, 24, 5.0, 1e-4),   # large scale -> running-max LSE path
        (300, 256, 24, 3.0, 5e-2),  # E >= 256 -> bf16 MXU feed (looser tol)
    ]
    for i, (nc_, e_, b_, s_, tol) in enumerate(cases):
        proxies, x, labels = make_inputs(i, nc_, e_, b_)
        loss = proxynca_prob_loss(x, proxies, labels, nc_, s_)
        loss = jax.block_until_ready(loss)
        ref = _reference_loss(x, proxies, labels, nc_, s_)
        assert jnp.allclose(loss, ref, rtol=tol, atol=tol), (i, loss, ref)

    print("KERNEL_OK")
</pallas_src>

<mosaic_0001>
module attributes {stable_mosaic.version = 11 : i64} {
  func.func @_proxynca_kernel(%arg0: i32, %arg1: i32, %arg2: memref<8x32xf32, #tpu.memory_space<vmem>>, %arg3: memref<128x32xf32, #tpu.memory_space<vmem>>, %arg4: memref<8x1xi32, #tpu.memory_space<vmem>>, %arg5: memref<8x1xf32, #tpu.memory_space<vmem>>, %arg6: memref<8x32xf32, #tpu.memory_space<vmem>>, %arg7: memref<8x1xf32, #tpu.memory_space<vmem>>, %arg8: memref<8x1xf32, #tpu.memory_space<vmem>>, %arg9: memref<8x1xf32, #tpu.memory_space<vmem>>) attributes {dimension_semantics = [#tpu.dimension_semantics<parallel>, #tpu.dimension_semantics<arbitrary>], iteration_bounds = array<i64: 1, 1>, scalar_prefetch = 0 : i64, scratch_operands = 4 : i64, tpu.core_type = #tpu.core_type<tc>, window_params = [{transform_indices = @transform_0, window_bounds = array<i64: 8, 32>}, {transform_indices = @transform_1, window_bounds = array<i64: 128, 32>}, {transform_indices = @transform_2, window_bounds = array<i64: 8, 1>}, {transform_indices = @transform_3, window_bounds = array<i64: 8, 1>}]} {
    %c0_i32 = arith.constant 0 : i32
    %0 = arith.cmpi eq, %arg1, %c0_i32 : i32
    %1 = arith.extui %0 : i1 to i32
    %c0_i32_0 = arith.constant 0 : i32
    %2 = arith.cmpi ne, %1, %c0_i32_0 : i32
    scf.if %2 {
      %c0_14 = arith.constant 0 : index
      %c0_15 = arith.constant 0 : index
      %31 = vector.load %arg2[%c0_14, %c0_15] : memref<8x32xf32, #tpu.memory_space<vmem>>, vector<8x32xf32>
      %32 = arith.mulf %31, %31 : vector<8x32xf32>
      %cst_16 = arith.constant dense<0.000000e+00> : vector<8xf32>
      %33 = vector.multi_reduction <add>, %32, %cst_16 [1] : vector<8x32xf32> to vector<8xf32>
      %34 = vector.shape_cast %33 : vector<8xf32> to vector<8x1xf32>
      %cst_17 = arith.constant 1.000000e-24 : f32
      %35 = vector.broadcast %cst_17 : f32 to vector<8x1xf32>
      %36 = arith.maximumf %34, %35 : vector<8x1xf32>
      %37 = math.rsqrt %36 : vector<8x1xf32>
      %cst_18 = arith.constant 6.000000e+00 : f32
      %38 = vector.broadcast %cst_18 : f32 to vector<8x1xf32>
      %39 = arith.mulf %38, %37 : vector<8x1xf32>
      %40 = vector.broadcast %39 : vector<8x1xf32> to vector<8x32xf32>
      %41 = arith.mulf %40, %31 : vector<8x32xf32>
      %c0_19 = arith.constant 0 : index
      %c0_20 = arith.constant 0 : index
      %42 = vector.load %arg6[%c0_19, %c0_20] : memref<8x32xf32, #tpu.memory_space<vmem>>, vector<8x32xf32>
      tpu.vector_store %arg6[%c0_19, %c0_20], %41 {strides = array<i32>} : memref<8x32xf32, #tpu.memory_space<vmem>>, vector<8x32xf32>,
      %cst_21 = arith.constant 0.000000e+00 : f32
      %43 = vector.broadcast %cst_21 : f32 to vector<8x1xf32>
      %c0_22 = arith.constant 0 : index
      %c0_23 = arith.constant 0 : index
      %44 = vector.load %arg8[%c0_22, %c0_23] : memref<8x1xf32, #tpu.memory_space<vmem>>, vector<8x1xf32>
      tpu.vector_store %arg8[%c0_22, %c0_23], %43 {strides = array<i32>} : memref<8x1xf32, #tpu.memory_space<vmem>>, vector<8x1xf32>,
      %cst_24 = arith.constant 0.000000e+00 : f32
      %45 = vector.broadcast %cst_24 : f32 to vector<8x1xf32>
      %c0_25 = arith.constant 0 : index
      %c0_26 = arith.constant 0 : index
      %46 = vector.load %arg9[%c0_25, %c0_26] : memref<8x1xf32, #tpu.memory_space<vmem>>, vector<8x1xf32>
      tpu.vector_store %arg9[%c0_25, %c0_26], %45 {strides = array<i32>} : memref<8x1xf32, #tpu.memory_space<vmem>>, vector<8x1xf32>,
    } else {
    }
    %c0 = arith.constant 0 : index
    %c0_1 = arith.constant 0 : index
    %3 = vector.load %arg3[%c0, %c0_1] : memref<128x32xf32, #tpu.memory_space<vmem>>, vector<128x32xf32>
    %4 = arith.mulf %3, %3 : vector<128x32xf32>
    %cst = arith.constant dense<0.000000e+00> : vector<128xf32>
    %5 = vector.multi_reduction <add>, %4, %cst [1] : vector<128x32xf32> to vector<128xf32>
    %6 = vector.shape_cast %5 : vector<128xf32> to vector<128x1xf32>
    %cst_2 = arith.constant 1.000000e-24 : f32
    %7 = vector.broadcast %cst_2 : f32 to vector<128x1xf32>
    %8 = arith.maximumf %6, %7 : vector<128x1xf32>
    %9 = math.rsqrt %8 : vector<128x1xf32>
    %cst_3 = arith.constant 3.000000e+00 : f32
    %10 = vector.broadcast %cst_3 : f32 to vector<128x1xf32>
    %11 = arith.mulf %10, %9 : vector<128x1xf32>
    %12 = vector.broadcast %11 : vector<128x1xf32> to vector<128x32xf32>
    %13 = arith.mulf %12, %3 : vector<128x32xf32>
    %c0_4 = arith.constant 0 : index
    %c0_5 = arith.constant 0 : index
    %14 = vector.load %arg6[%c0_4, %c0_5] : memref<8x32xf32, #tpu.memory_space<vmem>>, vector<8x32xf32>
    %cst_6 = arith.constant dense<0.000000e+00> : vector<8x128xf32>
    %15 = tpu.matmul %14, %13, %cst_6 {dimension_numbers = #tpu.dot_dimension_numbers<[1], [1], [0], [0], [0, 0, 1, 0], [], []>} : vector<8x32xf32>, vector<128x32xf32>, vector<8x128xf32> -> vector<8x128xf32>
    %cst_7 = arith.constant 1.800000e+01 : f32
    %16 = vector.broadcast %cst_7 : f32 to vector<8x128xf32>
    %17 = arith.subf %15, %16 : vector<8x128xf32>
    %cst_8 = arith.constant 0.000000e+00 : f32
    %18 = vector.broadcast %cst_8 : f32 to vector<8x128xf32>
    %19 = arith.minimumf %17, %18 : vector<8x128xf32>
    %20 = tpu.iota {dimensions = array<i32: 1>} : vector<8x128xi32>
    %c0_9 = arith.constant 0 : index
    %c0_10 = arith.constant 0 : index
    %21 = vector.load %arg4[%c0_9, %c0_10] : memref<8x1xi32, #tpu.memory_space<vmem>>, vector<8x1xi32>
    %c128_i32 = arith.constant 128 : i32
    %22 = arith.muli %arg1, %c128_i32 : i32
    %23 = vector.broadcast %22 : i32 to vector<8x1xi32>
    %24 = arith.subi %21, %23 : vector<8x1xi32>
    %c0_i32_11 = arith.constant 0 : i32
    %25 = arith.cmpi eq, %arg1, %c0_i32_11 : i32
    %true = arith.constant true
    %26 = arith.xori %25, %true : i1
    %27 = arith.extui %26 : i1 to i32
    %c0_i32_12 = arith.constant 0 : i32
    %28 = arith.cmpi ne, %27, %c0_i32_12 : i32
    scf.if %28 {
      %c0_14 = arith.constant 0 : index
      %c0_15 = arith.constant 0 : index
      %31 = vector.load %arg8[%c0_14, %c0_15] : memref<8x1xf32, #tpu.memory_space<vmem>>, vector<8x1xf32>
      %32 = math.exp %19 : vector<8x128xf32>
      %cst_16 = arith.constant dense<0.000000e+00> : vector<8xf32>
      %33 = vector.multi_reduction <add>, %32, %cst_16 [1] : vector<8x128xf32> to vector<8xf32>
      %34 = vector.shape_cast %33 : vector<8xf32> to vector<8x1xf32>
      %35 = arith.addf %31, %34 : vector<8x1xf32>
      %c0_17 = arith.constant 0 : index
      %c0_18 = arith.constant 0 : index
      %36 = vector.load %arg8[%c0_17, %c0_18] : memref<8x1xf32, #tpu.memory_space<vmem>>, vector<8x1xf32>
      tpu.vector_store %arg8[%c0_17, %c0_18], %35 {strides = array<i32>} : memref<8x1xf32, #tpu.memory_space<vmem>>, vector<8x1xf32>,
      %c0_19 = arith.constant 0 : index
      %c0_20 = arith.constant 0 : index
      %37 = vector.load %arg9[%c0_19, %c0_20] : memref<8x1xf32, #tpu.memory_space<vmem>>, vector<8x1xf32>
      %38 = vector.broadcast %24 : vector<8x1xi32> to vector<8x128xi32>
      %39 = arith.cmpi eq, %20, %38 : vector<8x128xi32>
      %cst_21 = arith.constant 0.000000e+00 : f32
      %40 = vector.broadcast %cst_21 : f32 to vector<8x128xf32>
      %41 = arith.select %39, %19, %40 : vector<8x128xi1>, vector<8x128xf32>
      %cst_22 = arith.constant dense<0.000000e+00> : vector<8xf32>
      %42 = vector.multi_reduction <add>, %41, %cst_22 [1] : vector<8x128xf32> to vector<8xf32>
      %43 = vector.shape_cast %42 : vector<8xf32> to vector<8x1xf32>
      %44 = arith.addf %37, %43 : vector<8x1xf32>
      %c0_23 = arith.constant 0 : index
      %c0_24 = arith.constant 0 : index
      %45 = vector.load %arg9[%c0_23, %c0_24] : memref<8x1xf32, #tpu.memory_space<vmem>>, vector<8x1xf32>
      tpu.vector_store %arg9[%c0_23, %c0_24], %44 {strides = array<i32>} : memref<8x1xf32, #tpu.memory_space<vmem>>, vector<8x1xf32>,
    } else {
    }
    %29 = arith.extui %25 : i1 to i32
    %c0_i32_13 = arith.constant 0 : i32
    %30 = arith.cmpi ne, %29, %c0_i32_13 : i32
    scf.if %30 {
      %c16_i32 = arith.constant 16 : i32
      %31 = vector.broadcast %c16_i32 : i32 to vector<8x128xi32>
      %32 = arith.cmpi slt, %20, %31 : vector<8x128xi32>
      %cst_14 = arith.constant -1.000000e+30 : f32
      %33 = vector.broadcast %cst_14 : f32 to vector<8x128xf32>
      %34 = arith.select %32, %19, %33 : vector<8x128xi1>, vector<8x128xf32>
      %c0_15 = arith.constant 0 : index
      %c0_16 = arith.constant 0 : index
      %35 = vector.load %arg8[%c0_15, %c0_16] : memref<8x1xf32, #tpu.memory_space<vmem>>, vector<8x1xf32>
      %36 = math.exp %34 : vector<8x128xf32>
      %cst_17 = arith.constant dense<0.000000e+00> : vector<8xf32>
      %37 = vector.multi_reduction <add>, %36, %cst_17 [1] : vector<8x128xf32> to vector<8xf32>
      %38 = vector.shape_cast %37 : vector<8xf32> to vector<8x1xf32>
      %39 = arith.addf %35, %38 : vector<8x1xf32>
      %c0_18 = arith.constant 0 : index
      %c0_19 = arith.constant 0 : index
      %40 = vector.load %arg8[%c0_18, %c0_19] : memref<8x1xf32, #tpu.memory_space<vmem>>, vector<8x1xf32>
      tpu.vector_store %arg8[%c0_18, %c0_19], %39 {strides = array<i32>} : memref<8x1xf32, #tpu.memory_space<vmem>>, vector<8x1xf32>,
      %c0_20 = arith.constant 0 : index
      %c0_21 = arith.constant 0 : index
      %41 = vector.load %arg9[%c0_20, %c0_21] : memref<8x1xf32, #tpu.memory_space<vmem>>, vector<8x1xf32>
      %42 = vector.broadcast %24 : vector<8x1xi32> to vector<8x128xi32>
      %43 = arith.cmpi eq, %20, %42 : vector<8x128xi32>
      %cst_22 = arith.constant 0.000000e+00 : f32
      %44 = vector.broadcast %cst_22 : f32 to vector<8x128xf32>
      %45 = arith.select %43, %34, %44 : vector<8x128xi1>, vector<8x128xf32>
      %cst_23 = arith.constant dense<0.000000e+00> : vector<8xf32>
      %46 = vector.multi_reduction <add>, %45, %cst_23 [1] : vector<8x128xf32> to vector<8xf32>
      %47 = vector.shape_cast %46 : vector<8xf32> to vector<8x1xf32>
      %48 = arith.addf %41, %47 : vector<8x1xf32>
      %c0_24 = arith.constant 0 : index
      %c0_25 = arith.constant 0 : index
      %49 = vector.load %arg9[%c0_24, %c0_25] : memref<8x1xf32, #tpu.memory_space<vmem>>, vector<8x1xf32>
      tpu.vector_store %arg9[%c0_24, %c0_25], %48 {strides = array<i32>} : memref<8x1xf32, #tpu.memory_space<vmem>>, vector<8x1xf32>,
      %c0_26 = arith.constant 0 : index
      %c0_27 = arith.constant 0 : index
      %50 = vector.load %arg8[%c0_26, %c0_27] : memref<8x1xf32, #tpu.memory_space<vmem>>, vector<8x1xf32>
      %51 = math.log %50 : vector<8x1xf32>
      %c0_28 = arith.constant 0 : index
      %c0_29 = arith.constant 0 : index
      %52 = vector.load %arg4[%c0_28, %c0_29] : memref<8x1xi32, #tpu.memory_space<vmem>>, vector<8x1xi32>
      %c0_i32_30 = arith.constant 0 : i32
      %53 = vector.broadcast %c0_i32_30 : i32 to vector<8x1xi32>
      %54 = arith.cmpi sge, %52, %53 : vector<8x1xi32>
      %c0_31 = arith.constant 0 : index
      %c0_32 = arith.constant 0 : index
      %55 = vector.load %arg9[%c0_31, %c0_32] : memref<8x1xf32, #tpu.memory_space<vmem>>, vector<8x1xf32>
      %56 = arith.subf %51, %55 : vector<8x1xf32>
      %cst_33 = arith.constant 0.000000e+00 : f32
      %57 = vector.broadcast %cst_33 : f32 to vector<8x1xf32>
      %58 = arith.select %54, %56, %57 : vector<8x1xi1>, vector<8x1xf32>
      %c0_34 = arith.constant 0 : index
      %c0_35 = arith.constant 0 : index
      %59 = vector.load %arg5[%c0_34, %c0_35] : memref<8x1xf32, #tpu.memory_space<vmem>>, vector<8x1xf32>
      tpu.vector_store %arg5[%c0_34, %c0_35], %58 {strides = array<i32>} : memref<8x1xf32, #tpu.memory_space<vmem>>, vector<8x1xf32>,
    } else {
    }
    return
  }
  func.func @transform_0(%arg0: i32, %arg1: i32) -> (i32, i32) {
    %c0_i32 = arith.constant 0 : i32
    %c0_i32_0 = arith.constant 0 : i32
    return %arg0, %c0_i32 : i32, i32
  }
  func.func @transform_1(%arg0: i32, %arg1: i32) -> (i32, i32) {
    %c0_i32 = arith.constant 0 : i32
    %c0_i32_0 = arith.constant 0 : i32
    return %arg1, %c0_i32 : i32, i32
  }
  func.func @transform_2(%arg0: i32, %arg1: i32) -> (i32, i32) {
    %c0_i32 = arith.constant 0 : i32
    %c0_i32_0 = arith.constant 0 : i32
    return %arg0, %c0_i32 : i32, i32
  }
  func.func @transform_3(%arg0: i32, %arg1: i32) -> (i32, i32) {
    %c0_i32 = arith.constant 0 : i32
    %c0_i32_0 = arith.constant 0 : i32
    return %arg0, %c0_i32 : i32, i32
  }
}

</mosaic_0001>

<llo_original>
// kernel: tpu_custom_call.1
$region0: #{tpu_custom_call.1}
  #allocation0 [shape = 'u32[]', space=smem, size = 0x4, offset = 0x4, fixed_abs, tag = 'smem constant byte address 0x4 - core index']
  #allocation1 [shape = 'u32[144,128]{1,0:T(1,128)}', space=vmem, size = 0x12000, scoped, tag = 'internal scratch']
  #allocation2 [shape = 'f32[8,32]{1,0:T(8,128)}', space=vmem, size = 0x1000, scoped, tag = 'scratch operand']
  #allocation3 [shape = 'f32[8,1]{1,0:T(8,128)}', space=vmem, size = 0x1000, scoped, tag = 'scratch operand']
  #allocation4 [shape = 'f32[8,1]{1,0:T(8,128)}', space=vmem, size = 0x1000, scoped, tag = 'scratch operand']
  #allocation5 [shape = 'f32[8,1]{1,0:T(8,128)}', space=vmem, size = 0x1000, scoped, tag = 'scratch operand']
  %s0 = inlined_call_operand.vmem [shape: f32[8,32], index: 0, kind: input, shape index: {}]
  %s1 = inlined_call_operand.vmem [shape: f32[128,32], index: 1, kind: input, shape index: {}]
  %s2 = inlined_call_operand.vmem [shape: s32[8,1], index: 2, kind: input, shape index: {}]
  %s3 = inlined_call_operand.vmem [shape: f32[8,1], index: 3, kind: output, shape index: {}]
  %s4 = sld [smem:[#allocation0]]
  $region34: #{tpu_custom_call.1} parent=0
    _
  %s6 = ssub.s32 1, %s4
  %s7 = scalar_select 0, %s6, %s4
  // Predicated region
  $region2: #{tpu_custom_call.1} parent=0 // pred_check
    _
  $region3: #{tpu_custom_call.1} parent=0 // pred_check_branch
    %9 = sbr.rel (0) target = $region5
  $region4: #{tpu_custom_call.1} parent=0 // pred_region
    _
  $region5: #{tpu_custom_call.1} parent=0 // pred_fallthru
    _
  // Predicated region
  $region6: #{tpu_custom_call.1} parent=0 // pred_check
    _
  $region7: #{tpu_custom_call.1} parent=0 // pred_check_branch
    %11 = sbr.rel (0) target = $region9
  $region8: #{tpu_custom_call.1} parent=0 // pred_region
    _
  $region9: #{tpu_custom_call.1} parent=0 // pred_fallthru
    _
  // Predicated region
  $region10: #{tpu_custom_call.1} parent=0 // pred_check
    _
  $region11: #{tpu_custom_call.1} parent=0 // pred_check_branch
    %13 = sbr.rel (0) target = $region13
  $region12: #{tpu_custom_call.1} parent=0 // pred_region
    _
  $region13: #{tpu_custom_call.1} parent=0 // pred_fallthru
    _
  %p14 = scmp.eq.s32.totalorder 0, 0
  // Predicated region
  $region14: #{tpu_custom_call.1} parent=0 // pred_check
    %p15 = pneg %p14
  $region15: #{tpu_custom_call.1} parent=0 // pred_check_branch
    %17 = sbr.rel (%p15) target = $region17
  $region16: #{tpu_custom_call.1} parent=0 // pred_region
    %v18 = vld [vmem:[%s0] sm:$0xff]
    %v19 = vmul.f32 %v18, %v18
    %vm20 = vcmask 261120
    %v21 = vsel %vm20, %v19, 0.0
    %22 = vadd.xlane.f32.xlu0 %v21
    %v23 = vpop.xlane.xlu0 %22
    %v24 = vmax.f32 %v23, 1e-24
    %v25 = vrsqrt.pop %v24
    %v26 = vmul.f32 %v25, 6.0
    %v27 = vmul.f32 %v26, %v18
    %28 = vst.msk [vmem:[#allocation2] sm:$0xff] %vm20, %v27
    %vm29 = vcmask 7168
    %30 = vst.msk [vmem:[#allocation4] sm:$0xff] %vm29, 0.0
    %31 = vst.msk [vmem:[#allocation5] sm:$0xff] %vm29, 0.0
  $region17: #{tpu_custom_call.1} parent=0 // pred_fallthru
    _
  %v32 = vld [vmem:[%s1] sm:$0xff]
  %v33 = vld [vmem:[%s1 + $0x8] sm:$0xff]
  %v34 = vld [vmem:[%s1 + $0x10] sm:$0xff]
  %v35 = vld [vmem:[%s1 + $0x18] sm:$0xff]
  %v36 = vld [vmem:[%s1 + $0x20] sm:$0xff]
  %v37 = vld [vmem:[%s1 + $0x28] sm:$0xff]
  %v38 = vld [vmem:[%s1 + $0x30] sm:$0xff]
  %v39 = vld [vmem:[%s1 + $0x38] sm:$0xff]
  %v40 = vld [vmem:[%s1 + $0x40] sm:$0xff]
  %v41 = vld [vmem:[%s1 + $0x48] sm:$0xff]
  %v42 = vld [vmem:[%s1 + $0x50] sm:$0xff]
  %v43 = vld [vmem:[%s1 + $0x58] sm:$0xff]
  %v44 = vld [vmem:[%s1 + $0x60] sm:$0xff]
  %v45 = vld [vmem:[%s1 + $0x68] sm:$0xff]
  %v46 = vld [vmem:[%s1 + $0x70] sm:$0xff]
  %v47 = vld [vmem:[%s1 + $0x78] sm:$0xff]
  %v48 = vmul.f32 %v32, %v32
  %v49 = vmul.f32 %v33, %v33
  %v50 = vmul.f32 %v34, %v34
  %v51 = vmul.f32 %v35, %v35
  %v52 = vmul.f32 %v36, %v36
  %v53 = vmul.f32 %v37, %v37
  %v54 = vmul.f32 %v38, %v38
  %v55 = vmul.f32 %v39, %v39
  %v56 = vmul.f32 %v40, %v40
  %v57 = vmul.f32 %v41, %v41
  %v58 = vmul.f32 %v42, %v42
  %v59 = vmul.f32 %v43, %v43
  %v60 = vmul.f32 %v44, %v44
  %v61 = vmul.f32 %v45, %v45
  %v62 = vmul.f32 %v46, %v46
  %v63 = vmul.f32 %v47, %v47
  %vm64 = vcmask 261120
  %v65 = vsel %vm64, %v48, 0.0
  %66 = vadd.xlane.f32.xlu0 %v65
  %v67 = vpop.xlane.xlu0 %66
  %v68 = vsel %vm64, %v49, 0.0
  %69 = vadd.xlane.f32.xlu0 %v68
  %v70 = vpop.xlane.xlu0 %69
  %v71 = vsel %vm64, %v50, 0.0
  %72 = vadd.xlane.f32.xlu0 %v71
  %v73 = vpop.xlane.xlu0 %72
  %v74 = vsel %vm64, %v51, 0.0
  %75 = vadd.xlane.f32.xlu0 %v74
  %v76 = vpop.xlane.xlu0 %75
  %v77 = vsel %vm64, %v52, 0.0
  %78 = vadd.xlane.f32.xlu0 %v77
  %v79 = vpop.xlane.xlu0 %78
  %v80 = vsel %vm64, %v53, 0.0
  %81 = vadd.xlane.f32.xlu0 %v80
  %v82 = vpop.xlane.xlu0 %81
  %v83 = vsel %vm64, %v54, 0.0
  %84 = vadd.xlane.f32.xlu0 %v83
  %v85 = vpop.xlane.xlu0 %84
  %v86 = vsel %vm64, %v55, 0.0
  %87 = vadd.xlane.f32.xlu0 %v86
  %v88 = vpop.xlane.xlu0 %87
  %v89 = vsel %vm64, %v56, 0.0
  %90 = vadd.xlane.f32.xlu0 %v89
  %v91 = vpop.xlane.xlu0 %90
  %v92 = vsel %vm64, %v57, 0.0
  %93 = vadd.xlane.f32.xlu0 %v92
  %v94 = vpop.xlane.xlu0 %93
  %v95 = vsel %vm64, %v58, 0.0
  %96 = vadd.xlane.f32.xlu0 %v95
  %v97 = vpop.xlane.xlu0 %96
  %v98 = vsel %vm64, %v59, 0.0
  %99 = vadd.xlane.f32.xlu0 %v98
  %v100 = vpop.xlane.xlu0 %99
  %v101 = vsel %vm64, %v60, 0.0
  %102 = vadd.xlane.f32.xlu0 %v101
  %v103 = vpop.xlane.xlu0 %102
  %v104 = vsel %vm64, %v61, 0.0
  %105 = vadd.xlane.f32.xlu0 %v104
  %v106 = vpop.xlane.xlu0 %105
  %v107 = vsel %vm64, %v62, 0.0
  %108 = vadd.xlane.f32.xlu0 %v107
  %v109 = vpop.xlane.xlu0 %108
  %v110 = vsel %vm64, %v63, 0.0
  %111 = vadd.xlane.f32.xlu0 %v110
  %v112 = vpop.xlane.xlu0 %111
  %v113 = vmax.f32 %v67, 1e-24
  %v114 = vmax.f32 %v70, 1e-24
  %v115 = vmax.f32 %v73, 1e-24
  %v116 = vmax.f32 %v76, 1e-24
  %v117 = vmax.f32 %v79, 1e-24
  %v118 = vmax.f32 %v82, 1e-24
  %v119 = vmax.f32 %v85, 1e-24
  %v120 = vmax.f32 %v88, 1e-24
  %v121 = vmax.f32 %v91, 1e-24
  %v122 = vmax.f32 %v94, 1e-24
  %v123 = vmax.f32 %v97, 1e-24
  %v124 = vmax.f32 %v100, 1e-24
  %v125 = vmax.f32 %v103, 1e-24
  %v126 = vmax.f32 %v106, 1e-24
  %v127 = vmax.f32 %v109, 1e-24
  %v128 = vmax.f32 %v112, 1e-24
  %v129 = vrsqrt.pop %v113
  %v130 = vrsqrt.pop %v114
  %v131 = vrsqrt.pop %v115
  %v132 = vrsqrt.pop %v116
  %v133 = vrsqrt.pop %v117
  %v134 = vrsqrt.pop %v118
  %v135 = vrsqrt.pop %v119
  %v136 = vrsqrt.pop %v120
  %v137 = vrsqrt.pop %v121
  %v138 = vrsqrt.pop %v122
  %v139 = vrsqrt.pop %v123
  %v140 = vrsqrt.pop %v124
  %v141 = vrsqrt.pop %v125
  %v142 = vrsqrt.pop %v126
  %v143 = vrsqrt.pop %v127
  %v144 = vrsqrt.pop %v128
  %v145 = vmul.f32 %v129, 3.0
  %v146 = vmul.f32 %v130, 3.0
  %v147 = vmul.f32 %v131, 3.0
  %v148 = vmul.f32 %v132, 3.0
  %v149 = vmul.f32 %v133, 3.0
  %v150 = vmul.f32 %v134, 3.0
  %v151 = vmul.f32 %v135, 3.0
  %v152 = vmul.f32 %v136, 3.0
  %v153 = vmul.f32 %v137, 3.0
  %v154 = vmul.f32 %v138, 3.0
  %v155 = vmul.f32 %v139, 3.0
  %v156 = vmul.f32 %v140, 3.0
  %v157 = vmul.f32 %v141, 3.0
  %v158 = vmul.f32 %v142, 3.0
  %v159 = vmul.f32 %v143, 3.0
  %v160 = vmul.f32 %v144, 3.0
  %v161 = vmul.f32 %v145, %v32
  %v162 = vmul.f32 %v146, %v33
  %v163 = vmul.f32 %v147, %v34
  %v164 = vmul.f32 %v148, %v35
  %v165 = vmul.f32 %v149, %v36
  %v166 = vmul.f32 %v150, %v37
  %v167 = vmul.f32 %v151, %v38
  %v168 = vmul.f32 %v152, %v39
  %v169 = vmul.f32 %v153, %v40
  %v170 = vmul.f32 %v154, %v41
  %v171 = vmul.f32 %v155, %v42
  %v172 = vmul.f32 %v156, %v43
  %v173 = vmul.f32 %v157, %v44
  %v174 = vmul.f32 %v158, %v45
  %v175 = vmul.f32 %v159, %v46
  %v176 = vmul.f32 %v160, %v47
  %v177 = vld [vmem:[#allocation2] sm:$0xff]
  %v179 = vsel %vm64, %v177, 0
  %v182 = vsel %vm64, %v161, 0
  %v185 = vsel %vm64, %v162, 0
  %v188 = vsel %vm64, %v163, 0
  %v191 = vsel %vm64, %v164, 0
  %v194 = vsel %vm64, %v165, 0
  %v197 = vsel %vm64, %v166, 0
  %v200 = vsel %vm64, %v167, 0
  %v203 = vsel %vm64, %v168, 0
  %v206 = vsel %vm64, %v169, 0
  %v209 = vsel %vm64, %v170, 0
  %v212 = vsel %vm64, %v171, 0
  %v215 = vsel %vm64, %v172, 0
  %v218 = vsel %vm64, %v173, 0
  %v221 = vsel %vm64, %v174, 0
  %v224 = vsel %vm64, %v175, 0
  %v227 = vsel %vm64, %v176, 0
  %229 = vmatprep.subr.mxu0 0.0
  %230 = vmatpush1.xpose.msra.mxu0 %v182
  %231 = vmatprep.subr.mxu0 0.0
  %232 = vmatpush1.xpose.msra.mxu0 %v185
  %233 = vmatprep.subr.mxu0 0.0
  %234 = vmatpush1.xpose.msra.mxu0 %v188
  %235 = vmatprep.subr.mxu0 0.0
  %236 = vmatpush1.xpose.msra.mxu0 %v191
  %237 = vmatprep.subr.mxu0 0.0
  %238 = vmatpush1.xpose.msra.mxu0 %v194
  %239 = vmatprep.subr.mxu0 0.0
  %240 = vmatpush1.xpose.msra.mxu0 %v197
  %241 = vmatprep.subr.mxu0 0.0
  %242 = vmatpush1.xpose.msra.mxu0 %v200
  %243 = vmatprep.subr.mxu0 0.0
  %244 = vmatpush1.xpose.msra.mxu0 %v203
  %245 = vmatprep.subr.mxu0 0.0
  %246 = vmatpush1.xpose.msra.mxu0 %v206
  %247 = vmatprep.subr.mxu0 0.0
  %248 = vmatpush1.xpose.msra.mxu0 %v209
  %249 = vmatprep.subr.mxu0 0.0
  %250 = vmatpush1.xpose.msra.mxu0 %v212
  %251 = vmatprep.subr.mxu0 0.0
  %252 = vmatpush1.xpose.msra.mxu0 %v215
  %253 = vmatprep.subr.mxu0 0.0
  %254 = vmatpush1.xpose.msra.mxu0 %v218
  %255 = vmatprep.subr.mxu0 0.0
  %256 = vmatpush1.xpose.msra.mxu0 %v221
  %257 = vmatprep.subr.mxu0 0.0
  %258 = vmatpush1.xpose.msra.mxu0 %v224
  %259 = vmatprep.subr.mxu0 0.0
  %260 = vmatpush1.xpose.msra.mxu0 %v227
  %261 = vmatprep.subr.mxu0 0.0
  %262 = vmatpush1.xpose.msra.mxu0 0.0
  %263 = vmatprep.subr.mxu0 0.0
  %264 = vmatpush1.xpose.msra.mxu0 0.0
  %265 = vmatprep.subr.mxu0 0.0
  %266 = vmatpush1.xpose.msra.mxu0 0.0
  %267 = vmatprep.subr.mxu0 0.0
  %268 = vmatpush1.xpose.msra.mxu0 0.0
  %269 = vmatprep.subr.mxu0 0.0
  %270 = vmatpush1.xpose.msra.mxu0 0.0
  %271 = vmatprep.subr.mxu0 0.0
  %272 = vmatpush1.xpose.msra.mxu0 0.0
  %273 = vmatprep.subr.mxu0 0.0
  %274 = vmatpush1.xpose.msra.mxu0 0.0
  %275 = vmatprep.subr.mxu0 0.0
  %276 = vmatpush1.xpose.msra.mxu0 0.0
  %277 = vmatprep.subr.mxu0 0.0
  %278 = vmatpush1.xpose.msra.mxu0 0.0
  %279 = vmatprep.subr.mxu0 0.0
  %280 = vmatpush1.xpose.msra.mxu0 0.0
  %281 = vmatprep.subr.mxu0 0.0
  %282 = vmatpush1.xpose.msra.mxu0 0.0
  %283 = vmatprep.subr.mxu0 0.0
  %284 = vmatpush1.xpose.msra.mxu0 0.0
  %285 = vmatprep.subr.mxu0 0.0
  %286 = vmatpush1.xpose.msra.mxu0 0.0
  %287 = vmatprep.subr.mxu0 0.0
  %288 = vmatpush1.xpose.msra.mxu0 0.0
  %289 = vmatprep.subr.mxu0 0.0
  %290 = vmatpush1.xpose.msra.mxu0 0.0
  %291 = vmatprep.subr.mxu0 0.0
  %292 = vmatpush1.xpose.msra.mxu0 0.0
  %293 = vmatprep.mubr.f32.mxu0 0.0
  %294 = vmatmul.mubr.f32.gmra.mrb[0].mxu0 %v179
  %v295 = vpop.f32.mrb[0].mxu0
  %v296 = vadd.f32 0.0, %v295
  %v297 = vpop.f32.mrb[0].mxu0
  %298 = vdwg.mxu0
  %v299 = vsub.f32 %v296, 18.0
  %v300 = vmin.f32 %v299, 0.0
  %v301 = vlaneseq
  %v302 = vand.u32 %v301, 127
  %v303 = vld [vmem:[%s2] sm:$0xff]
  %s304 = smul.u32 0, 128
  %v305 = vstv %s304
  %v306 = vsub.s32 %v303, %v305
  %p307 = scmp.ne.s32.totalorder 0, 0
  // Predicated region
  $region18: #{tpu_custom_call.1} parent=0 // pred_check
    %p308 = pneg %p307
  $region19: #{tpu_custom_call.1} parent=0 // pred_check_branch
    %310 = sbr.rel (%p308) target = $region21
  $region20: #{tpu_custom_call.1} parent=0 // pred_region
    %v311 = vld [vmem:[#allocation4] sm:$0xff]
    %v312 = vmul.f32 %v300, 1.442695
    %v313 = vpow.pop %v312
    %314 = vadd.xlane.f32.xlu0 %v313
    %v315 = vpop.xlane.xlu0 %314
    %v316 = vadd.f32 %v311, %v315
    %vm317 = vcmask 7168
    %318 = vst.msk [vmem:[#allocation4] sm:$0xff] %vm317, %v316
    %v319 = vld [vmem:[#allocation5] sm:$0xff]
    %320 = vset.pattern.permute.xlu0 0
    %321 = vperm.xlu0 %320, %v306
    %v322 = vpop.permute.xlu0 %321
    %vm323 = vcmp.eq.s32.totalorder %v302, %v322
    %v324 = vsel %vm323, %v300, 0.0
    %325 = vadd.xlane.f32.xlu0 %v324
    %v326 = vpop.xlane.xlu0 %325
    %v327 = vadd.f32 %v319, %v326
    %328 = vst.msk [vmem:[#allocation5] sm:$0xff] %vm317, %v327
  $region21: #{tpu_custom_call.1} parent=0 // pred_fallthru
    _
  // Predicated region
  $region22: #{tpu_custom_call.1} parent=0 // pred_check
    %p329 = pneg %p14
  $region23: #{tpu_custom_call.1} parent=0 // pred_check_branch
    %331 = sbr.rel (%p329) target = $region25
  $region24: #{tpu_custom_call.1} parent=0 // pred_region
    %vm332 = vcmp.lt.s32.totalorder %v302, 16
    %v333 = vsel %vm332, %v300, -1e+30
    %v334 = vld [vmem:[#allocation4] sm:$0xff]
    %v335 = vmul.f32 %v333, 1.442695
    %v336 = vpow.pop %v335
    %337 = vadd.xlane.f32.xlu0 %v336
    %v338 = vpop.xlane.xlu0 %337
    %v339 = vadd.f32 %v334, %v338
    %vm340 = vcmask 7168
    %341 = vst.msk [vmem:[#allocation4] sm:$0xff] %vm340, %v339
    %v342 = vld [vmem:[#allocation5] sm:$0xff]
    %343 = vset.pattern.permute.xlu0 0
    %344 = vperm.xlu0 %343, %v306
    %v345 = vpop.permute.xlu0 %344
    %vm346 = vcmp.eq.s32.totalorder %v302, %v345
    %v347 = vsel %vm346, %v333, 0.0
    %348 = vadd.xlane.f32.xlu0 %v347
    %v349 = vpop.xlane.xlu0 %348
    %v350 = vadd.f32 %v342, %v349
    %351 = vst.msk [vmem:[#allocation5] sm:$0xff] %vm340, %v350
    %v352 = vld [vmem:[#allocation4] sm:$0xff]
    %v353 = vlog2.pop %v352
    %v354 = vmul.f32 %v353, 0.6931472
    %v355 = vld [vmem:[%s2] sm:$0xff]
    %vm356 = vcmp.ge.s32.totalorder %v355, 0
    %v357 = vld [vmem:[#allocation5] sm:$0xff]
    %v358 = vsub.f32 %v354, %v357
    %v359 = vsel %vm356, %v358, 0.0
    %360 = vst.msk [vmem:[%s3] sm:$0xff] %vm340, %v359
  $region25: #{tpu_custom_call.1} parent=0 // pred_fallthru
    _
  // Predicated region
  $region26: #{tpu_custom_call.1} parent=0 // pred_check
    _
  $region27: #{tpu_custom_call.1} parent=0 // pred_check_branch
    %362 = sbr.rel (0) target = $region29
  $region28: #{tpu_custom_call.1} parent=0 // pred_region
    _
  $region29: #{tpu_custom_call.1} parent=0 // pred_fallthru
    _
  // Predicated region
  $region30: #{tpu_custom_call.1} parent=0 // pred_check
    _
  $region31: #{tpu_custom_call.1} parent=0 // pred_check_branch
    %364 = sbr.rel (0) target = $region33
  $region32: #{tpu_custom_call.1} parent=0 // pred_region
    _
  $region33: #{tpu_custom_call.1} parent=0 // pred_fallthru
    _

</llo_original>
